<compile_context>
chip_gen: v7x
topology: tpu7x:2x2x1
jax: 0.10.0
libtpu: 0.0.40
codegen_flags: <defaults>
</compile_context>

<pallas_src>
import functools

import jax
import jax.numpy as jnp
from jax.experimental import pallas as pl
from jax.experimental.pallas import tpu as pltpu

F32_MIN = float(jnp.finfo(jnp.float32).min)   # torch.finfo(float32).min
F32_EPS = float(jnp.finfo(jnp.float32).eps)   # torch.finfo(float32).eps

_LANE = 128
_ROW_ALIGN = 32                    # int8 mask sublane packing -> row tiles multiple of 32
_LIVE_F32 = 6                      # conservative count of live (tn, Cpad) f32 intermediates
_TARGET_BLOCK_BYTES = 2 * 1024 * 1024   # HBM-roofline knee for the logits block
_TARGET_STEPS = 8                  # enough steps for pipelining + both TCs on 2-TC parts


def _cdiv(a, b):
    return -(-a // b)


def _round_up(a, m):
    return _cdiv(a, m) * m


def _round_down(a, m):
    return (a // m) * m


_VMEM_CAP_CACHE = []


def _vmem_capacity_bytes():
    """Per-generation VMEM capacity (128 MiB v5e/v6e, 64 MiB v7x); conservative fallback."""
    if not _VMEM_CAP_CACHE:
        cap = 0
        try:
            cap = int(getattr(pltpu.get_tpu_info(), "vmem_capacity_bytes", 0))
        except Exception:
            cap = 0
        _VMEM_CAP_CACHE.append(cap if cap > 0 else 64 * 1024 * 1024)
    return _VMEM_CAP_CACHE[0]


# ---------------------------------------------------------------------------
# Kernel 1: full class dimension per block (common case).
# ---------------------------------------------------------------------------
def _propall_kernel(x_ref, t_ref, out_ref):
    x = x_ref[...].astype(jnp.float32)      # (TN, C) logits in f32
    mask = t_ref[...] != 0                  # (TN, C) candidate-label mask

    # softplus(x) == logsumexp([0, x]) over the stacked dim, computed stably.
    e = jnp.exp(-jnp.abs(x))
    tmp = jnp.maximum(x, 0.0) + jnp.log(1.0 + e)

    # second = sum_c (1 - t) * tmp == sum_c tmp - sum_c t * tmp   (t is a 0/1 mask)
    sum_tmp = jnp.sum(tmp, axis=1, keepdims=True)
    s = jnp.sum(jnp.where(mask, tmp, 0.0), axis=1, keepdims=True)
    second = sum_tmp - s

    temp = jnp.where(mask, x, F32_MIN)
    max_temp = jnp.max(temp, axis=1, keepdims=True)
    branch_a = jnp.log(1.0 - jnp.exp(-s) + F32_EPS)

    # Skip the per-element exp of the logsumexp branch when no row needs it.
    # The predicate is phrased as NOT(all(max_temp > -10)): unspecified data in the
    # ragged last block's padded rows (NaN / random bits) compares False and therefore
    # can only force the slow-but-exact path -- it can never steer a valid row onto the
    # wrong branch.  Padded output rows are dropped by Pallas anyway.
    all_branch_a = jnp.all(max_temp > -10.0)

    @pl.when(all_branch_a)
    def _():
        out_ref[...] = (second - branch_a).astype(out_ref.dtype)

    @pl.when(jnp.logical_not(all_branch_a))
    def _():
        lse = max_temp + jnp.log(
            jnp.sum(jnp.exp(temp - max_temp), axis=1, keepdims=True))
        first = jnp.where(max_temp > -10.0, branch_a, lse)
        out_ref[...] = (second - first).astype(out_ref.dtype)


def _call_simple(x, t, tn, vmem_limit):
    n, c = x.shape
    return pl.pallas_call(
        _propall_kernel,
        out_shape=jax.ShapeDtypeStruct((n, 1), jnp.float32),
        grid_spec=pltpu.PrefetchScalarGridSpec(
            num_scalar_prefetch=0,
            grid=(pl.cdiv(n, tn),),           # ragged last block: OOB rows dropped
            in_specs=[
                pl.BlockSpec((tn, c), lambda i: (i, 0)),
                pl.BlockSpec((tn, c), lambda i: (i, 0)),
            ],
            out_specs=pl.BlockSpec((tn, 1), lambda i: (i, 0)),
        ),
        compiler_params=pltpu.CompilerParams(
            dimension_semantics=("parallel",),
            vmem_limit_bytes=vmem_limit,
        ),
    )(x, t)


# ---------------------------------------------------------------------------
# Kernel 2: class-tiled reduction for very large C (per-row VMEM accumulators).
# ---------------------------------------------------------------------------
def _propall_ctiled_kernel(x_ref, t_ref, out_ref,
                           sum_tmp_acc, s_acc, m_acc, l_acc,
                           *, num_classes, col_block, mask_cols):
    j = pl.program_id(1)

    @pl.when(j == 0)
    def _():
        sum_tmp_acc[...] = jnp.zeros_like(sum_tmp_acc)
        s_acc[...] = jnp.zeros_like(s_acc)
        m_acc[...] = jnp.full(m_acc.shape, F32_MIN, dtype=jnp.float32)
        l_acc[...] = jnp.zeros_like(l_acc)

    x = x_ref[...].astype(jnp.float32)       # (TN, TC)
    mask = t_ref[...] != 0

    if mask_cols:  # ragged last class block: mask out-of-range columns
        col = j * col_block + jax.lax.broadcasted_iota(jnp.int32, x.shape, 1)
        col_ok = col < num_classes
        mask = jnp.logical_and(mask, col_ok)

    e = jnp.exp(-jnp.abs(x))
    tmp = jnp.maximum(x, 0.0) + jnp.log(1.0 + e)
    if mask_cols:
        tmp = jnp.where(col_ok, tmp, 0.0)

    sum_tmp_acc[...] += jnp.sum(tmp, axis=1, keepdims=True)
    s_acc[...] += jnp.sum(jnp.where(mask, tmp, 0.0), axis=1, keepdims=True)

    # Online logsumexp over temp = where(mask, x, F32_MIN).
    temp = jnp.where(mask, x, F32_MIN)
    blk_max = jnp.max(temp, axis=1, keepdims=True)
    m_old = m_acc[...]
    m_new = jnp.maximum(m_old, blk_max)
    p = jnp.exp(temp - m_new)
    if mask_cols:
        p = jnp.where(col_ok, p, 0.0)
    l_acc[...] = l_acc[...] * jnp.exp(m_old - m_new) + jnp.sum(p, axis=1, keepdims=True)
    m_acc[...] = m_new

    @pl.when(j == pl.num_programs(1) - 1)
    def _():
        s = s_acc[...]
        second = sum_tmp_acc[...] - s
        max_temp = m_acc[...]
        branch_a = jnp.log(1.0 - jnp.exp(-s) + F32_EPS)
        lse = max_temp + jnp.log(l_acc[...])
        first = jnp.where(max_temp > -10.0, branch_a, lse)
        out_ref[...] = (second - first).astype(out_ref.dtype)


def _call_ctiled(x, t, tn, tc, vmem_limit):
    n, c = x.shape
    kernel = functools.partial(
        _propall_ctiled_kernel,
        num_classes=c, col_block=tc, mask_cols=(c % tc) != 0)
    return pl.pallas_call(
        kernel,
        out_shape=jax.ShapeDtypeStruct((n, 1), jnp.float32),
        grid_spec=pltpu.PrefetchScalarGridSpec(
            num_scalar_prefetch=0,
            grid=(pl.cdiv(n, tn), pl.cdiv(c, tc)),   # class axis last (reduction)
            in_specs=[
                pl.BlockSpec((tn, tc), lambda i, j: (i, j)),
                pl.BlockSpec((tn, tc), lambda i, j: (i, j)),
            ],
            out_specs=pl.BlockSpec((tn, 1), lambda i, j: (i, 0)),
            scratch_shapes=[pltpu.VMEM((tn, 1), jnp.float32)] * 4,
        ),
        compiler_params=pltpu.CompilerParams(
            dimension_semantics=("parallel", "arbitrary"),
            vmem_limit_bytes=vmem_limit,
        ),
    )(x, t)


# ---------------------------------------------------------------------------
# Tile selection + wrapper.
# ---------------------------------------------------------------------------
def _pick_row_tile(n, per_row_bytes, row_x_bytes, budget):
    """Row tile sized by total resident VMEM and a bytes-per-step roofline target."""
    tn_vmem = max(1, budget // per_row_bytes)
    knee = max(1, _cdiv(_TARGET_BLOCK_BYTES, row_x_bytes))      # rows per ~2 MiB of logits
    # Aim for ~_TARGET_STEPS pipelined grid steps, but never drop below the roofline knee.
    tn = min(tn_vmem, max(knee, _cdiv(n, _TARGET_STEPS)))
    if tn >= n:
        return n                         # single full-extent block -- always layout-legal
    return max(_ROW_ALIGN, _round_down(tn, _ROW_ALIGN))


@functools.partial(jax.jit, static_argnames=("reduce", "row_tile", "col_tile"))
def propall(inputs, target, reduce="sum", row_tile=None, col_tile=None):
    """inputs: (N, C) logits (f32/bf16). target: (N, C) 0/1 candidate mask (int8/bool/float).

    Returns per-sample loss (N,) for reduce='sum' (the PyTorch module does no reduction
    in that mode) or a scalar mean for reduce='mean'.
    """
    assert inputs.ndim == 2 and inputs.shape == target.shape
    N, C = inputs.shape

    vmem_cap = _vmem_capacity_bytes()
    # Per-generation scoped-VMEM limit: ~48 MiB on 64 MiB parts (v7x), ~96 MiB on
    # 128 MiB parts (v5e/v6e); headroom left for Mosaic's own scratch.
    vmem_limit = max(32 * 1024 * 1024,
                     min(vmem_cap - 16 * 1024 * 1024, 96 * 1024 * 1024))
    budget = (vmem_limit * 17) // 20          # 85% of the limit for sized buffers

    bx = inputs.dtype.itemsize
    bt = max(target.dtype.itemsize, 1)
    cpad = _round_up(C, _LANE)
    row_x = cpad * bx                          # one lane-padded row of logits
    row_t = max(cpad * bt, _LANE)              # one lane-padded row of the mask
    # Resident VMEM per row on the full-C path: double-buffered input DMA tiles plus
    # ~_LIVE_F32 live (tn, Cpad) f32 intermediates inside the kernel.
    per_row = 2 * (row_x + row_t) + _LIVE_F32 * cpad * 4

    use_col_tiling = (col_tile is not None) or (per_row * _ROW_ALIGN > budget)

    if not use_col_tiling:
        if row_tile is None:
            tn = _pick_row_tile(N, per_row, row_x, budget)
        else:
            rt = int(row_tile)
            tn = N if rt >= N else max(_ROW_ALIGN, _round_down(rt, _ROW_ALIGN))
            if tn >= N:
                tn = N
        out = _call_simple(inputs, target, tn, vmem_limit)
    else:
        # Large-C path: tile the class axis, keep per-row running reductions in VMEM.
        if row_tile is None:
            tn = min(N, 8 * _ROW_ALIGN)
        else:
            rt = int(row_tile)
            tn = N if rt >= N else max(_ROW_ALIGN, _round_down(rt, _ROW_ALIGN))
            if tn >= N:
                tn = N
        per_elem = 2 * (bx + bt) + _LIVE_F32 * 4
        if col_tile is None:
            tc = max(_LANE, _round_down(budget // max(tn * per_elem, 1), _LANE))
        else:
            tc = max(_LANE, _round_down(int(col_tile), _LANE))
        if tc >= C:
            tc = C                              # single full-extent class block
        out = _call_ctiled(inputs, target, tn, tc, vmem_limit)

    results = out[:, 0]
    if reduce == "mean":
        results = jnp.mean(results)
    return results


# ---------------------------------------------------------------------------
# Pure-JAX reference (mirrors the PyTorch module, reduce='sum').
# ---------------------------------------------------------------------------
def _propall_ref(inputs, target):
    x = inputs.astype(jnp.float32)
    t = target.astype(jnp.float32)
    tmp = jnp.logaddexp(0.0, x)
    second = jnp.sum((1.0 - t) * tmp, axis=1)
    temp = jnp.where(t != 0.0, x, F32_MIN)
    max_temp = jnp.max(temp, axis=1)
    branch_a = jnp.log(1.0 - jnp.exp(-jnp.sum(t * tmp, axis=1)) + F32_EPS)
    lse = jax.scipy.special.logsumexp(temp, axis=1)
    first = jnp.where(max_temp > -10.0, branch_a, lse)
    return second - first


if __name__ == "__main__":
    key = jax.random.PRNGKey(0)
    k1, k2, k3, k4, k5, k6 = jax.random.split(key, 6)

    # Case 1: tiny shapes, single full block, fast path (no row needs branch B).
    N1, C1 = 8, 16
    x1 = jax.random.normal(k1, (N1, C1), dtype=jnp.float32)
    m1 = jax.random.uniform(k2, (N1, C1)) < 0.4
    m1 = m1.at[:, 0].set(True)                  # at least one candidate per row
    out1 = jax.block_until_ready(propall(x1, m1.astype(jnp.int8), reduce="sum"))
    ref1 = _propall_ref(x1, m1.astype(jnp.float32))
    assert out1.shape == (N1,)
    assert bool(jnp.all(jnp.isfinite(out1)))
    assert bool(jnp.allclose(out1, ref1, rtol=1e-5, atol=1e-5)), (out1, ref1)

    # Case 2: ragged row grid (row_tile=40 rounds to 32; N=100) with branch-B rows,
    # one of them (row 98) inside the ragged last block -> exercises the padded-row-safe
    # branch predicate.
    N2, C2 = 100, 16
    x2 = jax.random.normal(k3, (N2, C2), dtype=jnp.float32)
    x2 = x2.at[3].set(-40.0)
    x2 = x2.at[98].set(-50.0)
    m2 = jax.random.uniform(k4, (N2, C2)) < 0.4
    m2 = m2.at[:, 0].set(True)
    out2 = jax.block_until_ready(propall(x2, m2.astype(jnp.int8), reduce="sum", row_tile=40))
    ref2 = _propall_ref(x2, m2.astype(jnp.float32))
    assert out2.shape == (N2,)
    assert bool(jnp.all(jnp.isfinite(out2)))
    assert bool(jnp.allclose(out2, ref2, rtol=1e-5, atol=1e-4)), (out2, ref2)

    # Case 3: class-tiled path forced with small tiles; ragged class blocks
    # (300 = 2*128 + 44) exercise in-kernel column masking + the online logsumexp.
    N3, C3 = 64, 300
    x3 = jax.random.normal(k5, (N3, C3), dtype=jnp.float32)
    x3 = x3.at[17].set(-50.0)                   # branch-B row
    m3 = jax.random.uniform(k6, (N3, C3)) < 0.1
    m3 = m3.at[:, 5].set(True)
    out3 = jax.block_until_ready(
        propall(x3, m3.astype(jnp.int8), reduce="sum", row_tile=32, col_tile=128))
    ref3 = _propall_ref(x3, m3.astype(jnp.float32))
    assert out3.shape == (N3,)
    assert bool(jnp.all(jnp.isfinite(out3)))
    assert bool(jnp.allclose(out3, ref3, rtol=1e-5, atol=1e-4)), (out3, ref3)

    # Mean-reduction path.
    out_mean = jax.block_until_ready(propall(x1, m1.astype(jnp.int8), reduce="mean"))
    assert bool(jnp.allclose(out_mean, jnp.mean(ref1), rtol=1e-5, atol=1e-5))

    print("KERNEL_OK")
</pallas_src>

<mosaic_0001>
module attributes {stable_mosaic.version = 11 : i64} {
  func.func @_propall_kernel(%arg0: i32, %arg1: memref<8x16xf32, #tpu.memory_space<vmem>>, %arg2: memref<8x16xi8, #tpu.memory_space<vmem>>, %arg3: memref<8x1xf32, #tpu.memory_space<vmem>>) attributes {dimension_semantics = [#tpu.dimension_semantics<parallel>], iteration_bounds = array<i64: 1>, scalar_prefetch = 0 : i64, scratch_operands = 0 : i64, tpu.core_type = #tpu.core_type<tc>, window_params = [{transform_indices = @transform_0, window_bounds = array<i64: 8, 16>}, {transform_indices = @transform_1, window_bounds = array<i64: 8, 16>}, {transform_indices = @transform_2, window_bounds = array<i64: 8, 1>}]} {
    %c0 = arith.constant 0 : index
    %c0_0 = arith.constant 0 : index
    %0 = vector.load %arg1[%c0, %c0_0] : memref<8x16xf32, #tpu.memory_space<vmem>>, vector<8x16xf32>
    %c0_1 = arith.constant 0 : index
    %c0_2 = arith.constant 0 : index
    %1 = vector.load %arg2[%c0_1, %c0_2] : memref<8x16xi8, #tpu.memory_space<vmem>>, vector<8x16xi8>
    %c0_i8 = arith.constant 0 : i8
    %2 = vector.broadcast %c0_i8 : i8 to vector<8x16xi8>
    %3 = arith.cmpi ne, %1, %2 : vector<8x16xi8>
    %4 = math.absf %0 : vector<8x16xf32>
    %cst = arith.constant 0.000000e+00 : f32
    %5 = vector.broadcast %cst : f32 to vector<8x16xf32>
    %6 = arith.subf %5, %4 : vector<8x16xf32>
    %7 = math.exp %6 : vector<8x16xf32>
    %cst_3 = arith.constant 0.000000e+00 : f32
    %8 = vector.broadcast %cst_3 : f32 to vector<8x16xf32>
    %9 = arith.maximumf %0, %8 : vector<8x16xf32>
    %cst_4 = arith.constant 1.000000e+00 : f32
    %10 = vector.broadcast %cst_4 : f32 to vector<8x16xf32>
    %11 = arith.addf %10, %7 : vector<8x16xf32>
    %12 = math.log %11 : vector<8x16xf32>
    %13 = arith.addf %9, %12 : vector<8x16xf32>
    %cst_5 = arith.constant dense<0.000000e+00> : vector<8xf32>
    %14 = vector.multi_reduction <add>, %13, %cst_5 [1] : vector<8x16xf32> to vector<8xf32>
    %15 = vector.shape_cast %14 : vector<8xf32> to vector<8x1xf32>
    %cst_6 = arith.constant 0.000000e+00 : f32
    %16 = vector.broadcast %cst_6 : f32 to vector<8x16xf32>
    %17 = arith.select %3, %13, %16 : vector<8x16xi1>, vector<8x16xf32>
    %cst_7 = arith.constant dense<0.000000e+00> : vector<8xf32>
    %18 = vector.multi_reduction <add>, %17, %cst_7 [1] : vector<8x16xf32> to vector<8xf32>
    %19 = vector.shape_cast %18 : vector<8xf32> to vector<8x1xf32>
    %20 = arith.subf %15, %19 : vector<8x1xf32>
    %cst_8 = arith.constant -3.40282347E+38 : f32
    %21 = vector.broadcast %cst_8 : f32 to vector<8x16xf32>
    %22 = arith.select %3, %0, %21 : vector<8x16xi1>, vector<8x16xf32>
    %cst_9 = arith.constant dense<0xFF800000> : vector<8xf32>
    %23 = vector.multi_reduction <maximumf>, %22, %cst_9 [1] : vector<8x16xf32> to vector<8xf32>
    %24 = vector.shape_cast %23 : vector<8xf32> to vector<8x1xf32>
    %cst_10 = arith.constant 0.000000e+00 : f32
    %25 = vector.broadcast %cst_10 : f32 to vector<8x1xf32>
    %26 = arith.subf %25, %19 : vector<8x1xf32>
    %27 = math.exp %26 : vector<8x1xf32>
    %cst_11 = arith.constant 1.000000e+00 : f32
    %28 = vector.broadcast %cst_11 : f32 to vector<8x1xf32>
    %29 = arith.subf %28, %27 : vector<8x1xf32>
    %cst_12 = arith.constant 1.1920929E-7 : f32
    %30 = vector.broadcast %cst_12 : f32 to vector<8x1xf32>
    %31 = arith.addf %29, %30 : vector<8x1xf32>
    %32 = math.log %31 : vector<8x1xf32>
    %cst_13 = arith.constant -1.000000e+01 : f32
    %33 = vector.broadcast %cst_13 : f32 to vector<8x1xf32>
    %34 = arith.cmpf ogt, %24, %33 : vector<8x1xf32>
    %cst_14 = arith.constant 1.000000e+00 : f32
    %cst_15 = arith.constant 0.000000e+00 : f32
    %35 = vector.broadcast %cst_14 : f32 to vector<8x1xf32>
    %36 = vector.broadcast %cst_15 : f32 to vector<8x1xf32>
    %37 = arith.select %34, %35, %36 : vector<8x1xi1>, vector<8x1xf32>
    %38 = vector.shape_cast %37 : vector<8x1xf32> to vector<1x8x1xf32>
    %cst_16 = arith.constant dense<0x7F800000> : vector<1xf32>
    %39 = vector.multi_reduction <minimumf>, %38, %cst_16 [1, 2] : vector<1x8x1xf32> to vector<1xf32>
    %40 = vector.shape_cast %39 : vector<1xf32> to vector<1x1x1xf32>
    %41 = vector.extract %40[0, 0, 0] : f32 from vector<1x1x1xf32>
    %cst_17 = arith.constant 0.000000e+00 : f32
    %42 = arith.cmpf ogt, %41, %cst_17 : f32
    %43 = arith.extui %42 : i1 to i32
    %c0_i32 = arith.constant 0 : i32
    %44 = arith.cmpi ne, %43, %c0_i32 : i32
    scf.if %44 {
      %48 = arith.subf %20, %32 : vector<8x1xf32>
      %c0_19 = arith.constant 0 : index
      %c0_20 = arith.constant 0 : index
      %49 = vector.load %arg3[%c0_19, %c0_20] : memref<8x1xf32, #tpu.memory_space<vmem>>, vector<8x1xf32>
      tpu.vector_store %arg3[%c0_19, %c0_20], %48 {strides = array<i32>} : memref<8x1xf32, #tpu.memory_space<vmem>>, vector<8x1xf32>,
    } else {
    }
    %true = arith.constant true
    %45 = arith.xori %42, %true : i1
    %46 = arith.extui %45 : i1 to i32
    %c0_i32_18 = arith.constant 0 : i32
    %47 = arith.cmpi ne, %46, %c0_i32_18 : i32
    scf.if %47 {
      %48 = vector.broadcast %24 : vector<8x1xf32> to vector<8x16xf32>
      %49 = arith.subf %22, %48 : vector<8x16xf32>
      %50 = math.exp %49 : vector<8x16xf32>
      %cst_19 = arith.constant dense<0.000000e+00> : vector<8xf32>
      %51 = vector.multi_reduction <add>, %50, %cst_19 [1] : vector<8x16xf32> to vector<8xf32>
      %52 = vector.shape_cast %51 : vector<8xf32> to vector<8x1xf32>
      %53 = math.log %52 : vector<8x1xf32>
      %54 = arith.addf %24, %53 : vector<8x1xf32>
      %cst_20 = arith.constant -1.000000e+01 : f32
      %55 = vector.broadcast %cst_20 : f32 to vector<8x1xf32>
      %56 = arith.cmpf ogt, %24, %55 : vector<8x1xf32>
      %57 = arith.select %56, %32, %54 : vector<8x1xi1>, vector<8x1xf32>
      %58 = arith.subf %20, %57 : vector<8x1xf32>
      %c0_21 = arith.constant 0 : index
      %c0_22 = arith.constant 0 : index
      %59 = vector.load %arg3[%c0_21, %c0_22] : memref<8x1xf32, #tpu.memory_space<vmem>>, vector<8x1xf32>
      tpu.vector_store %arg3[%c0_21, %c0_22], %58 {strides = array<i32>} : memref<8x1xf32, #tpu.memory_space<vmem>>, vector<8x1xf32>,
    } else {
    }
    return
  }
  func.func @transform_0(%arg0: i32) -> (i32, i32) {
    %c0_i32 = arith.constant 0 : i32
    %c0_i32_0 = arith.constant 0 : i32
    return %arg0, %c0_i32 : i32, i32
  }
  func.func @transform_1(%arg0: i32) -> (i32, i32) {
    %c0_i32 = arith.constant 0 : i32
    %c0_i32_0 = arith.constant 0 : i32
    return %arg0, %c0_i32 : i32, i32
  }
  func.func @transform_2(%arg0: i32) -> (i32, i32) {
    %c0_i32 = arith.constant 0 : i32
    %c0_i32_0 = arith.constant 0 : i32
    return %arg0, %c0_i32 : i32, i32
  }
}

</mosaic_0001>

<llo_original>
// kernel: propall.1
$region0: #{propall.1}
  #allocation0 [shape = 'u32[]', space=smem, size = 0x4, offset = 0x4, fixed_abs, tag = 'smem constant byte address 0x4 - core index']
  #allocation1 [shape = 'u32[144,128]{1,0:T(1,128)}', space=vmem, size = 0x12000, scoped, tag = 'internal scratch']
  %s0 = inlined_call_operand.hbm [shape: f32[8,16], index: 0, kind: input, shape index: {}]
  %s1 = inlined_call_operand.vmem [shape: s8[8,16], index: 1, kind: input, shape index: {}]
  %s2 = inlined_call_operand.vmem [shape: f32[8,1], index: 2, kind: output, shape index: {}]
  %s3 = sld [smem:[#allocation0]]
  $region30: #{propall.1} parent=0
    _
  %s5 = ssub.s32 1, %s3
  %s6 = scalar_select 0, %s5, %s3
  $region1: #{propall.1} parent=0
    #allocation2 [shape = 'u8[4096]{0}', space=vmem, size = 0x1000, scoped, tag = 'input window, operand 0, single buffered']
    #allocation3 [shape = 's32[1]{0}', space=sflag, size = 0x4, scoped, tag = 'scoped memory for propall.1']
    %7 = vsyncpa [#allocation3], 0
    // Predicated region
    $region2: #{propall.1} parent=1 // pred_check
      _
    $region3: #{propall.1} parent=1 // pred_check_branch
      %9 = sbr.rel (0) target = $region5
    $region4: #{propall.1} parent=1 // pred_region
      %s11 = ssub.s32 128, 128
      %12 = vsyncadd [#allocation3], %s11
      %s14 = sshll.u32 [#allocation2], 4
      %s15 = int_to_ptr.vmem [resolvable:$true] %s14
      %17 = dma.hbm_to_vmem [thread:$0]  %s0, 128, %s15, [#allocation3]
    $region5: #{propall.1} parent=1 // pred_fallthru
      _
    // Predicated region
    $region6: #{propall.1} parent=1 // pred_check
      _
    $region7: #{propall.1} parent=1 // pred_check_branch
      %19 = sbr.rel (0) target = $region9
    $region8: #{propall.1} parent=1 // pred_region
      _
    $region9: #{propall.1} parent=1 // pred_fallthru
      _
    // Predicated region
    $region10: #{propall.1} parent=1 // pred_check
      _
    $region11: #{propall.1} parent=1 // pred_check_branch
      %21 = sbr.rel (0) target = $region13
    $region12: #{propall.1} parent=1 // pred_region
      %22 = dma.done [#allocation3], 128
    $region13: #{propall.1} parent=1 // pred_fallthru
      _
    %v25 = vld [vmem:[#allocation2] sm:$0xff]
    %v26 = vld [vmem:[%s1] sm:$0x3]
    %vm27 = vnez %v26
    %v28 = vand.u32 2147483647, %v25
    %v29 = vsub.f32 0.0, %v28
    %v30 = vmul.f32 %v29, 1.442695
    %v31 = vpow.pop %v30
    %v32 = vmax.f32 %v25, 0.0
    %v33 = vadd.f32 %v31, 1.0
    %v34 = vlog2.pop %v33
    %v35 = vmul.f32 %v34, 0.6931472
    %v36 = vadd.f32 %v32, %v35
    %vm37 = vcmask 130048
    %v38 = vsel %vm37, %v36, 0.0
    %39 = vadd.xlane.f32.xlu0 %v38
    %v40 = vpop.xlane.xlu0 %39
    %v41 = vsel %vm27, 16843009, 0
    %v42 = vunpack.c.0.s8 %v41
    %vm43 = vcmp.ne.s32.totalorder %v42, 0
    %v44 = vsel %vm43, %v36, 0.0
    %v45 = vsel %vm37, %v44, 0.0
    %46 = vadd.xlane.f32.xlu0 %v45
    %v47 = vpop.xlane.xlu0 %46
    %v48 = vsub.f32 %v40, %v47
    %v49 = vsel %vm43, %v25, -3.4028235e+38
    %v50 = vsel %vm37, %v49, -inf
    %51 = vmax.xlane.f32.xlu0 %v50
    %v52 = vpop.xlane.xlu0 %51
    %v53 = vsub.f32 0.0, %v47
    %v54 = vmul.f32 %v53, 1.442695
    %v55 = vpow.pop %v54
    %v56 = vsub.f32 1.0, %v55
    %v57 = vadd.f32 %v56, 1.1920929e-07
    %v58 = vlog2.pop %v57
    %v59 = vmul.f32 %v58, 0.6931472
    %vm60 = vcmp.gt.f32.partialorder %v52, -10.0
    %v61 = vsel %vm60, 1.0, 0.0
    %v62 = vrot.slane %v61, 4
    %v63 = vmin.f32 %v61, %v62
    %v64 = vrot.slane %v63, 2
    %v65 = vmin.f32 %v63, %v64
    %v66 = vrot.slane %v65, 1
    %v67 = vmin.f32 %v65, %v66
    %s68 = vtos %v67
    %p69 = scmp.gt.f32.partialorder %s68, 0.0
    // Predicated region
    $region14: #{propall.1} parent=1 // pred_check
      %p70 = pneg %p69
    $region15: #{propall.1} parent=1 // pred_check_branch
      %72 = sbr.rel (%p70) target = $region17
    $region16: #{propall.1} parent=1 // pred_region
      %v73 = vsub.f32 %v48, %v59
      %vm74 = vcmask 7168
      %75 = vst.msk [vmem:[%s2] sm:$0xff] %vm74, %v73
    $region17: #{propall.1} parent=1 // pred_fallthru
      _
    %p76 = pneg %p69
    // Predicated region
    $region18: #{propall.1} parent=1 // pred_check
      _
    $region19: #{propall.1} parent=1 // pred_check_branch
      %78 = sbr.rel (%p69) target = $region21
    $region20: #{propall.1} parent=1 // pred_region
      %v79 = vsub.f32 %v49, %v52
      %v80 = vmul.f32 %v79, 1.442695
      %v81 = vpow.pop %v80
      %v82 = vsel %vm37, %v81, 0.0
      %83 = vadd.xlane.f32.xlu0 %v82
      %v84 = vpop.xlane.xlu0 %83
      %v85 = vlog2.pop %v84
      %v86 = vmul.f32 %v85, 0.6931472
      %v87 = vadd.f32 %v52, %v86
      %v88 = vsel %vm60, %v59, %v87
      %v89 = vsub.f32 %v48, %v88
      %vm90 = vcmask 7168
      %91 = vst.msk [vmem:[%s2] sm:$0xff] %vm90, %v89
    $region21: #{propall.1} parent=1 // pred_fallthru
      _
    // Predicated region
    $region22: #{propall.1} parent=1 // pred_check
      _
    $region23: #{propall.1} parent=1 // pred_check_branch
      %93 = sbr.rel (0) target = $region25
    $region24: #{propall.1} parent=1 // pred_region
      _
    $region25: #{propall.1} parent=1 // pred_fallthru
      _
    // Predicated region
    $region26: #{propall.1} parent=1 // pred_check
      _
    $region27: #{propall.1} parent=1 // pred_check_branch
      %95 = sbr.rel (0) target = $region29
    $region28: #{propall.1} parent=1 // pred_region
      _
    $region29: #{propall.1} parent=1 // pred_fallthru
      _
    %96 = vsyncpa [#allocation3], 1

</llo_original>
